<compile_context>
chip_gen: v5e
topology: v5e:2x2
jax: 0.10.0
libtpu: 0.0.40
codegen_flags: <defaults>
</compile_context>

<pallas_src>
import functools

import jax
import jax.numpy as jnp
from jax.experimental import pallas as pl
from jax.experimental.pallas import tpu as pltpu

_RMS_EPS = 1.1920929e-07  # torch.finfo(torch.float32).eps  (nn.RMSNorm eps=None)


def _round_up(x, m):
    return ((x + m - 1) // m) * m


def _cdiv(a, b):
    return (a + b - 1) // b


def _device_vmem_bytes():
    """Physical VMEM per TensorCore (64 MiB on v7x, 128 MiB on v5e/v6e)."""
    try:
        cap = getattr(pltpu.get_tpu_info(), "vmem_capacity_bytes", None)
        if cap:
            return int(cap)
    except Exception:
        pass
    return 64 << 20  # conservative default (works on every generation)


def _num_tensorcores():
    """TensorCores per chip (2 on v7x, 1 on v5e/v6e)."""
    try:
        info = pltpu.get_tpu_info()
        for name in ("num_cores", "core_count", "num_tensorcores", "tensorcore_count"):
            v = getattr(info, name, None)
            if isinstance(v, int) and 1 <= v <= 8:
                return v
    except Exception:
        pass
    try:
        kind = jax.devices()[0].device_kind.lower()
        if "v7" in kind or "7x" in kind:
            return 2
    except Exception:
        pass
    return 1


def _hadamard_adapter_kernel(e_ref, c_ref, wt_ref, bt_ref, wa_ref, ba_ref, o_ref,
                             *, d_in_true, compute_dtype):
    inv_n = jnp.float32(1.0 / d_in_true)
    wt = wt_ref[...]
    bt = bt_ref[...]

    def transform(x):
        # RMSNorm in f32.  Padded feature lanes are zero, so the square-sum is
        # exact; divide by the TRUE feature count, not the padded one.  x is
        # overwritten by its normalized value so no extra (tm, D) f32
        # temporary stays live.
        x = x.astype(jnp.float32)
        ms = jnp.sum(x * x, axis=-1, keepdims=True) * inv_n
        x = x * jax.lax.rsqrt(ms + _RMS_EPS)
        # transform Linear on the MXU against the resident W_t (f32 accumulate).
        return jnp.dot(x.astype(compute_dtype), wt,
                       preferred_element_type=jnp.float32) + bt

    # Two separate dots against the resident W_t instead of a sublane
    # concatenate + one fused dot: removes a full VPU copy per tile.
    h = transform(e_ref[...]) * transform(c_ref[...])

    # adapter Linear on the MXU.
    y = jnp.dot(h.astype(compute_dtype), wa_ref[...],
                preferred_element_type=jnp.float32) + ba_ref[...]
    o_ref[...] = y.astype(o_ref.dtype)


def prepare_hadamard_adapter_params(w_t, b_t, w_a, b_a, *, compute_dtype=jnp.bfloat16):
    """Pad + cast the weights ONCE (hoisted out of the per-forward path).

    w_t: (D_in, D_in), b_t: (D_in,)     transform Linear, stored as (in, out)
    w_a: (D_in, D_out), b_a: (D_out,)   adapter Linear,   stored as (in, out)
    """
    d_in = int(w_t.shape[0])
    d_out = int(w_a.shape[1])
    d_in_p = _round_up(d_in, 128)
    d_out_p = _round_up(d_out, 128)
    wt_p = jnp.pad(w_t.astype(compute_dtype),
                   ((0, d_in_p - d_in), (0, d_in_p - d_in)))
    wa_p = jnp.pad(w_a.astype(compute_dtype),
                   ((0, d_in_p - d_in), (0, d_out_p - d_out)))
    bt_p = jnp.pad(b_t.astype(jnp.float32), (0, d_in_p - d_in)).reshape(1, d_in_p)
    ba_p = jnp.pad(b_a.astype(jnp.float32), (0, d_out_p - d_out)).reshape(1, d_out_p)
    return {"wt": wt_p, "bt": bt_p, "wa": wa_p, "ba": ba_p,
            "d_in": d_in, "d_out": d_out, "compute_dtype": compute_dtype}


def hadamard_adapter_apply(embeddings, contexts, params, *, tm=512,
                           single_buffer_weights=True):
    """Forward pass of HadamardAdapter with pre-prepared (padded/cast) weights."""
    d_in = params["d_in"]
    d_out = params["d_out"]
    compute_dtype = params["compute_dtype"]
    wt_p, bt_p, wa_p, ba_p = params["wt"], params["bt"], params["wa"], params["ba"]
    d_in_p = wt_p.shape[0]
    d_out_p = wa_p.shape[1]

    assert embeddings.shape == contexts.shape and embeddings.shape[-1] == d_in
    lead = embeddings.shape[:-1]
    e2 = embeddings.reshape(-1, d_in)
    c2 = contexts.reshape(-1, d_in)
    m = e2.shape[0]
    out_dtype = embeddings.dtype

    # Lane padding of the activations only when needed (d_in not a multiple of
    # 128).  No row padding: the ragged last row-block uses Pallas partial
    # block load/store; garbage rows are row-local and never written back.
    if d_in_p != d_in:
        e2 = jnp.pad(e2, ((0, 0), (0, d_in_p - d_in)))
        c2 = jnp.pad(c2, ((0, 0), (0, d_in_p - d_in)))

    in_bytes = e2.dtype.itemsize
    w_bytes = jnp.dtype(compute_dtype).itemsize
    out_bytes = jnp.dtype(out_dtype).itemsize

    vmem_budget = int(0.8 * _device_vmem_bytes())
    num_cores = _num_tensorcores()

    # --- row tile selection --------------------------------------------------
    w_buf = 1 if single_buffer_weights else 2
    fixed_bytes = (w_buf * (d_in_p * d_in_p + d_in_p * d_out_p) * w_bytes
                   + 2 * 2 * (d_in_p + d_out_p) * 4)

    def step_bytes(t):
        act_in = 2 * 2 * t * d_in_p * in_bytes      # e, c tiles, double-buffered
        act_out = 2 * t * d_out_p * out_bytes       # out tile, double-buffered
        # in-kernel f32 temporaries (normalized x, t_e, t_c, h, y) — counted
        # explicitly per review feedback.
        tmp = (4 * t * d_in_p + 2 * t * d_out_p) * 4
        return act_in + act_out + tmp

    tm_row_cap = (m // 8) * 8 if m >= 8 else max(m, 1)
    tm_eff = min(max(8, _round_up(tm, 8)), tm_row_cap)

    def _shrink(t):
        if t > 128:
            return max(128, ((t - 1) // 128) * 128)
        return max(8, ((t // 2 + 7) // 8) * 8)

    while tm_eff > 8 and fixed_bytes + step_bytes(tm_eff) > vmem_budget:
        tm_eff = _shrink(tm_eff)
    # TODO(synk): for very large D_in where the resident W_t/W_a alone exceed
    # the VMEM budget (notably v7x's 64 MiB), stream W_t/W_a with a K-axis grid
    # dimension + f32 accumulator instead of keeping them resident.

    # Only split rows finer than the VMEM-optimal tile on multi-TensorCore
    # chips (v7x).  Target >= 4 grid steps per core when the row count allows,
    # so both cores get work AND the software pipeline can overlap DMA/compute.
    if num_cores > 1 and m >= 2 * num_cores * 8:
        target_steps = min(4 * num_cores, _cdiv(m, 8))
        tm_par = max(8, _round_up(_cdiv(m, target_steps), 8))
        tm_eff = min(tm_eff, tm_par)

    tm_eff = max(1, min(tm_eff, tm_row_cap))
    grid = (_cdiv(m, tm_eff),)

    vmem_est = fixed_bytes + step_bytes(tm_eff)
    vmem_limit = int(min(vmem_budget, max(32 << 20, 2 * vmem_est)))

    cost = pl.CostEstimate(
        flops=int(2 * m * d_in * (2 * d_in + d_out)),
        transcendentals=int(2 * m),                     # one rsqrt per row of e and c
        bytes_accessed=int(2 * m * d_in_p * in_bytes
                           + (d_in_p * d_in_p + d_in_p * d_out_p) * w_bytes
                           + 2 * (d_in_p + d_out_p) * 4
                           + m * d_out_p * out_bytes),
    )

    compiler_params = pltpu.CompilerParams(
        dimension_semantics=("parallel",),
        vmem_limit_bytes=vmem_limit,
    )

    kernel = functools.partial(_hadamard_adapter_kernel,
                               d_in_true=d_in, compute_dtype=compute_dtype)

    def _call(weight_mode):
        def resident(shape):
            if weight_mode is None:
                return pl.BlockSpec(shape, lambda i: (0, 0))
            return pl.BlockSpec(shape, lambda i: (0, 0), pipeline_mode=weight_mode)

        return pl.pallas_call(
            kernel,
            out_shape=jax.ShapeDtypeStruct((m, d_out_p), out_dtype),
            grid_spec=pltpu.PrefetchScalarGridSpec(
                num_scalar_prefetch=0,
                grid=grid,
                in_specs=[
                    pl.BlockSpec((tm_eff, d_in_p), lambda i: (i, 0)),   # embeddings
                    pl.BlockSpec((tm_eff, d_in_p), lambda i: (i, 0)),   # contexts
                    resident((d_in_p, d_in_p)),                         # W_t (resident)
                    resident((1, d_in_p)),                              # b_t
                    resident((d_in_p, d_out_p)),                        # W_a (resident)
                    resident((1, d_out_p)),                             # b_a
                ],
                out_specs=pl.BlockSpec((tm_eff, d_out_p), lambda i: (i, 0)),
            ),
            compiler_params=compiler_params,
            cost_estimate=cost,
        )(e2, c2, wt_p, bt_p, wa_p, ba_p)

    weight_mode = None
    if single_buffer_weights and hasattr(pl, "Buffered"):
        try:
            weight_mode = pl.Buffered(1)   # single-buffer the grid-resident weights
        except (TypeError, ValueError):
            weight_mode = None

    if weight_mode is not None:
        try:
            out_p = _call(weight_mode)
        except (TypeError, ValueError, NotImplementedError, pltpu.LoweringException):
            # pipeline_mode / Buffered(1) unsupported by this build: fall back.
            # A constant index_map still avoids per-step weight re-fetch.
            out_p = _call(None)
    else:
        out_p = _call(None)

    out = out_p[:, :d_out] if d_out_p != d_out else out_p
    return out.reshape(*lead, d_out)


def hadamard_adapter(embeddings, contexts, w_t, b_t, w_a, b_a, *,
                     tm=512, compute_dtype=jnp.bfloat16, single_buffer_weights=True):
    """Convenience one-shot wrapper (prefer preparing params once and reusing)."""
    params = prepare_hadamard_adapter_params(w_t, b_t, w_a, b_a,
                                             compute_dtype=compute_dtype)
    return hadamard_adapter_apply(embeddings, contexts, params, tm=tm,
                                  single_buffer_weights=single_buffer_weights)


def _reference(embeddings, contexts, w_t, b_t, w_a, b_a):
    def transform(x):
        x = x.astype(jnp.float32)
        ms = jnp.mean(x * x, axis=-1, keepdims=True)
        return (x * jax.lax.rsqrt(ms + _RMS_EPS)) @ w_t + b_t

    return (transform(embeddings) * transform(contexts)) @ w_a + b_a


if __name__ == "__main__":
    # Small shapes consistent with the module: batch=2, seq=8, input_size=32,
    # output_size=64.
    B, S = 2, 8
    input_size, output_size = 32, 64

    key = jax.random.PRNGKey(0)
    k_e, k_c, k_wt, k_bt, k_wa, k_ba = jax.random.split(key, 6)

    embeddings = jax.random.normal(k_e, (B, S, input_size), dtype=jnp.float32)
    contexts = jax.random.normal(k_c, (B, S, input_size), dtype=jnp.float32)

    # Deterministic parameter init (Linear weights stored as (in, out)).
    w_t = jax.random.normal(k_wt, (input_size, input_size), dtype=jnp.float32) / jnp.sqrt(input_size)
    b_t = jax.random.normal(k_bt, (input_size,), dtype=jnp.float32) * 0.01
    w_a = jax.random.normal(k_wa, (input_size, output_size), dtype=jnp.float32) / jnp.sqrt(input_size)
    b_a = jax.random.normal(k_ba, (output_size,), dtype=jnp.float32) * 0.01

    ref = _reference(embeddings, contexts, w_t, b_t, w_a, b_a)

    # Weight pad/cast hoisted out of the per-forward path (done once here).
    params_f32 = prepare_hadamard_adapter_params(w_t, b_t, w_a, b_a,
                                                 compute_dtype=jnp.float32)
    params_bf16 = prepare_hadamard_adapter_params(w_t, b_t, w_a, b_a,
                                                  compute_dtype=jnp.bfloat16)

    # 1) f32 MXU path: tight semantic check against the f32 reference.
    out_f32 = jax.block_until_ready(
        hadamard_adapter_apply(embeddings, contexts, params_f32))
    assert out_f32.shape == (B, S, output_size)
    assert jnp.allclose(out_f32, ref, atol=1e-5, rtol=1e-5), "f32 path mismatch"

    # 2) Default bf16 MXU path (f32 accumulation): looser, bf16-appropriate check.
    out_bf16 = jax.block_until_ready(
        hadamard_adapter_apply(embeddings, contexts, params_bf16))
    assert out_bf16.shape == (B, S, output_size)
    scale = float(jnp.max(jnp.abs(ref)))
    max_err = float(jnp.max(jnp.abs(out_bf16.astype(jnp.float32) - ref)))
    assert max_err <= 0.05 * scale + 1e-3, f"bf16 path error too large: {max_err}"

    # 3) Ragged row count: exercises the partial last row-block path
    #    (no wrapper-side row padding anymore).
    e2 = jax.random.normal(k_e, (2, 9, input_size), dtype=jnp.float32)
    c2 = jax.random.normal(k_c, (2, 9, input_size), dtype=jnp.float32)
    out2 = jax.block_until_ready(hadamard_adapter_apply(e2, c2, params_f32))
    assert out2.shape == (2, 9, output_size)
    assert jnp.allclose(out2, _reference(e2, c2, w_t, b_t, w_a, b_a),
                        atol=1e-5, rtol=1e-5), "ragged-M mismatch"

    print("KERNEL_OK")
</pallas_src>

<mosaic_0001>
module attributes {stable_mosaic.version = 11 : i64} {
  func.func @_hadamard_adapter_kernel(%arg0: i32, %arg1: memref<16x128xf32, #tpu.memory_space<vmem>>, %arg2: memref<16x128xf32, #tpu.memory_space<vmem>>, %arg3: memref<128x128xf32, #tpu.memory_space<vmem>>, %arg4: memref<1x128xf32, #tpu.memory_space<vmem>>, %arg5: memref<128x128xf32, #tpu.memory_space<vmem>>, %arg6: memref<1x128xf32, #tpu.memory_space<vmem>>, %arg7: memref<16x128xf32, #tpu.memory_space<vmem>>) attributes {dimension_semantics = [#tpu.dimension_semantics<parallel>], iteration_bounds = array<i64: 1>, scalar_prefetch = 0 : i64, scratch_operands = 0 : i64, tpu.core_type = #tpu.core_type<tc>, window_params = [{transform_indices = @transform_0, window_bounds = array<i64: 16, 128>}, {transform_indices = @transform_1, window_bounds = array<i64: 16, 128>}, {pipeline_mode = #tpu.pipeline_mode<synchronous>, transform_indices = @transform_2, window_bounds = array<i64: 128, 128>}, {pipeline_mode = #tpu.pipeline_mode<synchronous>, transform_indices = @transform_3, window_bounds = array<i64: 1, 128>}, {pipeline_mode = #tpu.pipeline_mode<synchronous>, transform_indices = @transform_4, window_bounds = array<i64: 128, 128>}, {pipeline_mode = #tpu.pipeline_mode<synchronous>, transform_indices = @transform_5, window_bounds = array<i64: 1, 128>}, {transform_indices = @transform_6, window_bounds = array<i64: 16, 128>}]} {
    %c0 = arith.constant 0 : index
    %c0_0 = arith.constant 0 : index
    %0 = vector.load %arg3[%c0, %c0_0] : memref<128x128xf32, #tpu.memory_space<vmem>>, vector<128x128xf32>
    %c0_1 = arith.constant 0 : index
    %c0_2 = arith.constant 0 : index
    %1 = vector.load %arg4[%c0_1, %c0_2] : memref<1x128xf32, #tpu.memory_space<vmem>>, vector<1x128xf32>
    %c0_3 = arith.constant 0 : index
    %c0_4 = arith.constant 0 : index
    %2 = vector.load %arg1[%c0_3, %c0_4] : memref<16x128xf32, #tpu.memory_space<vmem>>, vector<16x128xf32>
    %3 = arith.mulf %2, %2 : vector<16x128xf32>
    %cst = arith.constant dense<0.000000e+00> : vector<16xf32>
    %4 = vector.multi_reduction <add>, %3, %cst [1] : vector<16x128xf32> to vector<16xf32>
    %5 = vector.shape_cast %4 : vector<16xf32> to vector<16x1xf32>
    %cst_5 = arith.constant 3.125000e-02 : f32
    %6 = vector.broadcast %cst_5 : f32 to vector<16x1xf32>
    %7 = arith.mulf %5, %6 : vector<16x1xf32>
    %cst_6 = arith.constant 1.1920929E-7 : f32
    %8 = vector.broadcast %cst_6 : f32 to vector<16x1xf32>
    %9 = arith.addf %7, %8 : vector<16x1xf32>
    %10 = math.rsqrt %9 : vector<16x1xf32>
    %11 = vector.broadcast %10 : vector<16x1xf32> to vector<16x128xf32>
    %12 = arith.mulf %2, %11 : vector<16x128xf32>
    %cst_7 = arith.constant dense<0.000000e+00> : vector<16x128xf32>
    %13 = tpu.matmul %12, %0, %cst_7 {dimension_numbers = #tpu.dot_dimension_numbers<[1], [0], [0], [1], [0, 0, 1, 1], [], []>} : vector<16x128xf32>, vector<128x128xf32>, vector<16x128xf32> -> vector<16x128xf32>
    %14 = vector.broadcast %1 : vector<1x128xf32> to vector<16x128xf32>
    %15 = arith.addf %13, %14 : vector<16x128xf32>
    %c0_8 = arith.constant 0 : index
    %c0_9 = arith.constant 0 : index
    %16 = vector.load %arg2[%c0_8, %c0_9] : memref<16x128xf32, #tpu.memory_space<vmem>>, vector<16x128xf32>
    %17 = arith.mulf %16, %16 : vector<16x128xf32>
    %cst_10 = arith.constant dense<0.000000e+00> : vector<16xf32>
    %18 = vector.multi_reduction <add>, %17, %cst_10 [1] : vector<16x128xf32> to vector<16xf32>
    %19 = vector.shape_cast %18 : vector<16xf32> to vector<16x1xf32>
    %cst_11 = arith.constant 3.125000e-02 : f32
    %20 = vector.broadcast %cst_11 : f32 to vector<16x1xf32>
    %21 = arith.mulf %19, %20 : vector<16x1xf32>
    %cst_12 = arith.constant 1.1920929E-7 : f32
    %22 = vector.broadcast %cst_12 : f32 to vector<16x1xf32>
    %23 = arith.addf %21, %22 : vector<16x1xf32>
    %24 = math.rsqrt %23 : vector<16x1xf32>
    %25 = vector.broadcast %24 : vector<16x1xf32> to vector<16x128xf32>
    %26 = arith.mulf %16, %25 : vector<16x128xf32>
    %cst_13 = arith.constant dense<0.000000e+00> : vector<16x128xf32>
    %27 = tpu.matmul %26, %0, %cst_13 {dimension_numbers = #tpu.dot_dimension_numbers<[1], [0], [0], [1], [0, 0, 1, 1], [], []>} : vector<16x128xf32>, vector<128x128xf32>, vector<16x128xf32> -> vector<16x128xf32>
    %28 = vector.broadcast %1 : vector<1x128xf32> to vector<16x128xf32>
    %29 = arith.addf %27, %28 : vector<16x128xf32>
    %30 = arith.mulf %15, %29 : vector<16x128xf32>
    %c0_14 = arith.constant 0 : index
    %c0_15 = arith.constant 0 : index
    %31 = vector.load %arg5[%c0_14, %c0_15] : memref<128x128xf32, #tpu.memory_space<vmem>>, vector<128x128xf32>
    %cst_16 = arith.constant dense<0.000000e+00> : vector<16x128xf32>
    %32 = tpu.matmul %30, %31, %cst_16 {dimension_numbers = #tpu.dot_dimension_numbers<[1], [0], [0], [1], [0, 0, 1, 1], [], []>} : vector<16x128xf32>, vector<128x128xf32>, vector<16x128xf32> -> vector<16x128xf32>
    %c0_17 = arith.constant 0 : index
    %c0_18 = arith.constant 0 : index
    %33 = vector.load %arg6[%c0_17, %c0_18] : memref<1x128xf32, #tpu.memory_space<vmem>>, vector<1x128xf32>
    %34 = vector.broadcast %33 : vector<1x128xf32> to vector<16x128xf32>
    %35 = arith.addf %32, %34 : vector<16x128xf32>
    %c0_19 = arith.constant 0 : index
    %c0_20 = arith.constant 0 : index
    %36 = vector.load %arg7[%c0_19, %c0_20] : memref<16x128xf32, #tpu.memory_space<vmem>>, vector<16x128xf32>
    tpu.vector_store %arg7[%c0_19, %c0_20], %35 {strides = array<i32>} : memref<16x128xf32, #tpu.memory_space<vmem>>, vector<16x128xf32>,
    return
  }
  func.func @transform_0(%arg0: i32) -> (i32, i32) {
    %c0_i32 = arith.constant 0 : i32
    %c0_i32_0 = arith.constant 0 : i32
    return %arg0, %c0_i32 : i32, i32
  }
  func.func @transform_1(%arg0: i32) -> (i32, i32) {
    %c0_i32 = arith.constant 0 : i32
    %c0_i32_0 = arith.constant 0 : i32
    return %arg0, %c0_i32 : i32, i32
  }
  func.func @transform_2(%arg0: i32) -> (i32, i32) {
    %c0_i32 = arith.constant 0 : i32
    %c0_i32_0 = arith.constant 0 : i32
    %c0_i32_1 = arith.constant 0 : i32
    return %c0_i32, %c0_i32_0 : i32, i32
  }
  func.func @transform_3(%arg0: i32) -> (i32, i32) {
    %c0_i32 = arith.constant 0 : i32
    %c0_i32_0 = arith.constant 0 : i32
    %c0_i32_1 = arith.constant 0 : i32
    return %c0_i32, %c0_i32_0 : i32, i32
  }
  func.func @transform_4(%arg0: i32) -> (i32, i32) {
    %c0_i32 = arith.constant 0 : i32
    %c0_i32_0 = arith.constant 0 : i32
    %c0_i32_1 = arith.constant 0 : i32
    return %c0_i32, %c0_i32_0 : i32, i32
  }
  func.func @transform_5(%arg0: i32) -> (i32, i32) {
    %c0_i32 = arith.constant 0 : i32
    %c0_i32_0 = arith.constant 0 : i32
    %c0_i32_1 = arith.constant 0 : i32
    return %c0_i32, %c0_i32_0 : i32, i32
  }
  func.func @transform_6(%arg0: i32) -> (i32, i32) {
    %c0_i32 = arith.constant 0 : i32
    %c0_i32_0 = arith.constant 0 : i32
    return %arg0, %c0_i32 : i32, i32
  }
}

</mosaic_0001>

<llo_original>
// kernel: tpu_custom_call.1
$region0: #{tpu_custom_call.1}
  #allocation0 [shape = 'u32[]', space=smem, size = 0x4, offset = 0x4, fixed_abs, tag = 'smem constant byte address 0x4 - core index']
  #allocation1 [shape = 'u32[72,128]{1,0:T(1,128)}', space=vmem, size = 0x9000, scoped, tag = 'internal scratch']
  %s0 = inlined_call_operand.hbm [shape: f32[16,128], index: 0, kind: input, shape index: {}]
  %s1 = inlined_call_operand.hbm [shape: f32[16,128], index: 1, kind: input, shape index: {}]
  %s2 = inlined_call_operand.hbm [shape: f32[128,128], index: 2, kind: input, shape index: {}]
  %s3 = inlined_call_operand.vmem [shape: f32[1,128], index: 3, kind: input, shape index: {}]
  %s4 = inlined_call_operand.hbm [shape: f32[128,128], index: 4, kind: input, shape index: {}]
  %s5 = inlined_call_operand.vmem [shape: f32[1,128], index: 5, kind: input, shape index: {}]
  %s6 = inlined_call_operand.hbm [shape: f32[16,128], index: 6, kind: output, shape index: {}]
  %s7 = sld [smem:[#allocation0]]
  $region50: #{tpu_custom_call.1} parent=0
    _
  %s9 = ssub.s32 1, %s7
  %s10 = scalar_select 0, %s9, %s7
  $region1: #{tpu_custom_call.1} parent=0
    #allocation2 [shape = 'u8[8192]{0}', space=vmem, size = 0x2000, scoped, tag = 'input window, operand 0, single buffered']
    #allocation3 [shape = 's32[1]{0}', space=sflag, size = 0x4, scoped, tag = 'scoped memory for tpu_custom_call.1']
    #allocation4 [shape = 's32[1]{0}', space=sflag, size = 0x4, scoped, tag = 'scoped memory for tpu_custom_call.1']
    #allocation5 [shape = 'u8[8192]{0}', space=vmem, size = 0x2000, scoped, tag = 'input window, operand 1, single buffered']
    #allocation6 [shape = 's32[1]{0}', space=sflag, size = 0x4, scoped, tag = 'scoped memory for tpu_custom_call.1']
    #allocation7 [shape = 'u8[65536]{0}', space=vmem, size = 0x10000, scoped, tag = 'input window, operand 2, single buffered']
    #allocation8 [shape = 'u8[65536]{0}', space=vmem, size = 0x10000, scoped, tag = 'input window, operand 4, single buffered']
    #allocation9 [shape = 's32[1]{0}', space=sflag, size = 0x4, scoped, tag = 'scoped memory for tpu_custom_call.1']
    #allocation10 [shape = 'u8[8192]{0}', space=vmem, size = 0x2000, scoped, tag = 'output window, operand 0, single buffered']
    %11 = vsyncpa [#allocation3], 0
    %12 = vsyncpa [#allocation6], 0
    %13 = vsyncpa [#allocation9], 0
    %14 = vsyncpa [#allocation4], 0
    // Predicated region
    $region2: #{tpu_custom_call.1} parent=1 // pred_check
      _
    $region3: #{tpu_custom_call.1} parent=1 // pred_check_branch
      %16 = sbr.rel (0) target = $region5
    $region4: #{tpu_custom_call.1} parent=1 // pred_region
      %18 = vsyncadd [#allocation3], 0
      %s19 = sshll.u32 %s0, 4
      %s20 = int_to_ptr.hbm [resolvable:$true] %s19
      %s21 = sshll.u32 [#allocation2], 4
      %s22 = int_to_ptr.vmem [resolvable:$true] %s21
      %27 = dma.hbm_to_vmem [thread:$0]  %s20, 256, %s22, [#allocation3], 128, 128, 8
    $region5: #{tpu_custom_call.1} parent=1 // pred_fallthru
      _
    // Predicated region
    $region6: #{tpu_custom_call.1} parent=1 // pred_check
      _
    $region7: #{tpu_custom_call.1} parent=1 // pred_check_branch
      %29 = sbr.rel (0) target = $region9
    $region8: #{tpu_custom_call.1} parent=1 // pred_region
      %31 = vsyncadd [#allocation6], 0
      %s32 = sshll.u32 %s1, 4
      %s33 = int_to_ptr.hbm [resolvable:$true] %s32
      %s34 = sshll.u32 [#allocation5], 4
      %s35 = int_to_ptr.vmem [resolvable:$true] %s34
      %40 = dma.hbm_to_vmem [thread:$0]  %s33, 256, %s35, [#allocation6], 128, 128, 8
    $region9: #{tpu_custom_call.1} parent=1 // pred_fallthru
      _
    // Predicated region
    $region10: #{tpu_custom_call.1} parent=1 // pred_check
      _
    $region11: #{tpu_custom_call.1} parent=1 // pred_check_branch
      %42 = sbr.rel (0) target = $region13
    $region12: #{tpu_custom_call.1} parent=1 // pred_region
      %44 = vsyncadd [#allocation6], 0
      %s45 = sshll.u32 %s2, 4
      %s46 = int_to_ptr.hbm [resolvable:$true] %s45
      %s47 = sshll.u32 [#allocation7], 4
      %s48 = int_to_ptr.vmem [resolvable:$true] %s47
      %53 = dma.hbm_to_vmem [thread:$0]  %s46, 2048, %s48, [#allocation6], 128, 128, 8
    $region13: #{tpu_custom_call.1} parent=1 // pred_fallthru
      _
    // Predicated region
    $region14: #{tpu_custom_call.1} parent=1 // pred_check
      _
    $region15: #{tpu_custom_call.1} parent=1 // pred_check_branch
      %55 = sbr.rel (0) target = $region17
    $region16: #{tpu_custom_call.1} parent=1 // pred_region
      _
    $region17: #{tpu_custom_call.1} parent=1 // pred_fallthru
      _
    // Predicated region
    $region18: #{tpu_custom_call.1} parent=1 // pred_check
      _
    $region19: #{tpu_custom_call.1} parent=1 // pred_check_branch
      %57 = sbr.rel (0) target = $region21
    $region20: #{tpu_custom_call.1} parent=1 // pred_region
      %59 = vsyncadd [#allocation9], 0
      %s60 = sshll.u32 %s4, 4
      %s61 = int_to_ptr.hbm [resolvable:$true] %s60
      %s62 = sshll.u32 [#allocation8], 4
      %s63 = int_to_ptr.vmem [resolvable:$true] %s62
      %68 = dma.hbm_to_vmem [thread:$0]  %s61, 2048, %s63, [#allocation9], 128, 128, 8
    $region21: #{tpu_custom_call.1} parent=1 // pred_fallthru
      _
    // Predicated region
    $region22: #{tpu_custom_call.1} parent=1 // pred_check
      _
    $region23: #{tpu_custom_call.1} parent=1 // pred_check_branch
      %70 = sbr.rel (0) target = $region25
    $region24: #{tpu_custom_call.1} parent=1 // pred_region
      _
    $region25: #{tpu_custom_call.1} parent=1 // pred_fallthru
      _
    // Predicated region
    $region26: #{tpu_custom_call.1} parent=1 // pred_check
      _
    $region27: #{tpu_custom_call.1} parent=1 // pred_check_branch
      %72 = sbr.rel (0) target = $region29
    $region28: #{tpu_custom_call.1} parent=1 // pred_region
      %74 = dma.done [#allocation3], 256
    $region29: #{tpu_custom_call.1} parent=1 // pred_fallthru
      _
    // Predicated region
    $region30: #{tpu_custom_call.1} parent=1 // pred_check
      _
    $region31: #{tpu_custom_call.1} parent=1 // pred_check_branch
      %76 = sbr.rel (0) target = $region33
    $region32: #{tpu_custom_call.1} parent=1 // pred_region
      %78 = dma.done [#allocation6], 256
    $region33: #{tpu_custom_call.1} parent=1 // pred_fallthru
      _
    // Predicated region
    $region34: #{tpu_custom_call.1} parent=1 // pred_check
      _
    $region35: #{tpu_custom_call.1} parent=1 // pred_check_branch
      %80 = sbr.rel (0) target = $region37
    $region36: #{tpu_custom_call.1} parent=1 // pred_region
      %82 = dma.done [#allocation6], 2048
    $region37: #{tpu_custom_call.1} parent=1 // pred_fallthru
      _
    // Predicated region
    $region38: #{tpu_custom_call.1} parent=1 // pred_check
      _
    $region39: #{tpu_custom_call.1} parent=1 // pred_check_branch
      %84 = sbr.rel (0) target = $region41
    $region40: #{tpu_custom_call.1} parent=1 // pred_region
      %86 = dma.done [#allocation9], 2048
    $region41: #{tpu_custom_call.1} parent=1 // pred_fallthru
      _
    %v87 = vld [vmem:[#allocation7] sm:$0xff]
    %v88 = vld [vmem:[#allocation7 + $0x8] sm:$0xff]
    %v89 = vld [vmem:[#allocation7 + $0x10] sm:$0xff]
    %v90 = vld [vmem:[#allocation7 + $0x18] sm:$0xff]
    %v91 = vld [vmem:[#allocation7 + $0x20] sm:$0xff]
    %v92 = vld [vmem:[#allocation7 + $0x28] sm:$0xff]
    %v93 = vld [vmem:[#allocation7 + $0x30] sm:$0xff]
    %v94 = vld [vmem:[#allocation7 + $0x38] sm:$0xff]
    %v95 = vld [vmem:[#allocation7 + $0x40] sm:$0xff]
    %v96 = vld [vmem:[#allocation7 + $0x48] sm:$0xff]
    %v97 = vld [vmem:[#allocation7 + $0x50] sm:$0xff]
    %v98 = vld [vmem:[#allocation7 + $0x58] sm:$0xff]
    %v99 = vld [vmem:[#allocation7 + $0x60] sm:$0xff]
    %v100 = vld [vmem:[#allocation7 + $0x68] sm:$0xff]
    %v101 = vld [vmem:[#allocation7 + $0x70] sm:$0xff]
    %v102 = vld [vmem:[#allocation7 + $0x78] sm:$0xff]
    %v103 = vld [vmem:[%s3] sm:$0x1]
    %v104 = vld [vmem:[#allocation2] sm:$0xff]
    %v105 = vld [vmem:[#allocation2 + $0x8] sm:$0xff]
    %v106 = vmul.f32 %v104, %v104
    %v107 = vmul.f32 %v105, %v105
    %108 = vadd.xlane.f32.xlu0 %v106
    %v109 = vpop.xlane.xlu0 %108
    %110 = vadd.xlane.f32.xlu0 %v107
    %v111 = vpop.xlane.xlu0 %110
    %v112 = vmul.f32 %v109, 0.03125
    %v113 = vmul.f32 %v111, 0.03125
    %v114 = vadd.f32 %v112, 1.1920929e-07
    %v115 = vadd.f32 %v113, 1.1920929e-07
    %v116 = vrsqrt.pop %v114
    %v117 = vmul.f32 %v116, %v114
    %v118 = vmul.f32 %v117, %v116
    %v119 = vmul.f32 0.5, %v118
    %v120 = vsub.f32 1.5, %v119
    %v121 = vmul.f32 %v116, %v120
    %vm122 = vweird.f32 %v114
    %vm123 = vweird.f32 %v116
    %vm124 = vmor %vm122, %vm123
    %v125 = vsel %vm124, %v116, %v121
    %v126 = vrsqrt.pop %v115
    %v127 = vmul.f32 %v126, %v115
    %v128 = vmul.f32 %v127, %v126
    %v129 = vmul.f32 0.5, %v128
    %v130 = vsub.f32 1.5, %v129
    %v131 = vmul.f32 %v126, %v130
    %vm132 = vweird.f32 %v115
    %vm133 = vweird.f32 %v126
    %vm134 = vmor %vm132, %vm133
    %v135 = vsel %vm134, %v126, %v131
    %v136 = vmul.f32 %v104, %v125
    %v137 = vmul.f32 %v105, %v135
    %v139 = vperm.slane %v103, 0
    %141 = vmatpush.msra.mxu0 %v102
    %142 = vmatpush.msra.mxu0 %v101
    %143 = vmatpush.msra.mxu0 %v100
    %144 = vmatpush.msra.mxu0 %v99
    %145 = vmatpush.msra.mxu0 %v98
    %146 = vmatpush.msra.mxu0 %v97
    %147 = vmatpush.msra.mxu0 %v96
    %148 = vmatpush.msra.mxu0 %v95
    %149 = vmatpush.msra.mxu0 %v94
    %150 = vmatpush.msra.mxu0 %v93
    %151 = vmatpush.msra.mxu0 %v92
    %152 = vmatpush.msra.mxu0 %v91
    %153 = vmatpush.msra.mxu0 %v90
    %154 = vmatpush.msra.mxu0 %v89
    %155 = vmatpush.msra.mxu0 %v88
    %156 = vmatpush.msra.mxu0 %v87
    %157 = vmatmul.f32.gmra.mxu0 %v136
    %v158 = vpop.f32.mrf.mxu0
    %v159 = vadd.f32 %v139, %v158
    %160 = vmatmul.f32.gmra.mxu0 %v137
    %v161 = vpop.f32.mrf.mxu0
    %v162 = vadd.f32 %v139, %v161
    %163 = vdwg.mxu0
    %v164 = vld [vmem:[#allocation5] sm:$0xff]
    %v165 = vld [vmem:[#allocation5 + $0x8] sm:$0xff]
    %v166 = vmul.f32 %v164, %v164
    %v167 = vmul.f32 %v165, %v165
    %168 = vadd.xlane.f32.xlu0 %v166
    %v169 = vpop.xlane.xlu0 %168
    %170 = vadd.xlane.f32.xlu0 %v167
    %v171 = vpop.xlane.xlu0 %170
    %v172 = vmul.f32 %v169, 0.03125
    %v173 = vmul.f32 %v171, 0.03125
    %v174 = vadd.f32 %v172, 1.1920929e-07
    %v175 = vadd.f32 %v173, 1.1920929e-07
    %v176 = vrsqrt.pop %v174
    %v177 = vmul.f32 %v176, %v174
    %v178 = vmul.f32 %v177, %v176
    %v179 = vmul.f32 0.5, %v178
    %v180 = vsub.f32 1.5, %v179
    %v181 = vmul.f32 %v176, %v180
    %vm182 = vweird.f32 %v174
    %vm183 = vweird.f32 %v176
    %vm184 = vmor %vm182, %vm183
    %v185 = vsel %vm184, %v176, %v181
    %v186 = vrsqrt.pop %v175
    %v187 = vmul.f32 %v186, %v175
    %v188 = vmul.f32 %v187, %v186
    %v189 = vmul.f32 0.5, %v188
    %v190 = vsub.f32 1.5, %v189
    %v191 = vmul.f32 %v186, %v190
    %vm192 = vweird.f32 %v175
    %vm193 = vweird.f32 %v186
    %vm194 = vmor %vm192, %vm193
    %v195 = vsel %vm194, %v186, %v191
    %v196 = vmul.f32 %v164, %v185
    %v197 = vmul.f32 %v165, %v195
    %198 = vmatpush.msra.mxu0 %v102
    %199 = vmatpush.msra.mxu0 %v101
    %200 = vmatpush.msra.mxu0 %v100
    %201 = vmatpush.msra.mxu0 %v99
    %202 = vmatpush.msra.mxu0 %v98
    %203 = vmatpush.msra.mxu0 %v97
    %204 = vmatpush.msra.mxu0 %v96
    %205 = vmatpush.msra.mxu0 %v95
    %206 = vmatpush.msra.mxu0 %v94
    %207 = vmatpush.msra.mxu0 %v93
    %208 = vmatpush.msra.mxu0 %v92
    %209 = vmatpush.msra.mxu0 %v91
    %210 = vmatpush.msra.mxu0 %v90
    %211 = vmatpush.msra.mxu0 %v89
    %212 = vmatpush.msra.mxu0 %v88
    %213 = vmatpush.msra.mxu0 %v87
    %214 = vmatmul.f32.gmra.mxu0 %v196
    %v215 = vpop.f32.mrf.mxu0
    %v216 = vadd.f32 %v139, %v215
    %217 = vmatmul.f32.gmra.mxu0 %v197
    %v218 = vpop.f32.mrf.mxu0
    %v219 = vadd.f32 %v139, %v218
    %220 = vdwg.mxu0
    %v221 = vmul.f32 %v159, %v216
    %v222 = vmul.f32 %v162, %v219
    %v223 = vld [vmem:[#allocation8] sm:$0xff]
    %v224 = vld [vmem:[#allocation8 + $0x8] sm:$0xff]
    %v225 = vld [vmem:[#allocation8 + $0x10] sm:$0xff]
    %v226 = vld [vmem:[#allocation8 + $0x18] sm:$0xff]
    %v227 = vld [vmem:[#allocation8 + $0x20] sm:$0xff]
    %v228 = vld [vmem:[#allocation8 + $0x28] sm:$0xff]
    %v229 = vld [vmem:[#allocation8 + $0x30] sm:$0xff]
    %v230 = vld [vmem:[#allocation8 + $0x38] sm:$0xff]
    %v231 = vld [vmem:[#allocation8 + $0x40] sm:$0xff]
    %v232 = vld [vmem:[#allocation8 + $0x48] sm:$0xff]
    %v233 = vld [vmem:[#allocation8 + $0x50] sm:$0xff]
    %v234 = vld [vmem:[#allocation8 + $0x58] sm:$0xff]
    %v235 = vld [vmem:[#allocation8 + $0x60] sm:$0xff]
    %v236 = vld [vmem:[#allocation8 + $0x68] sm:$0xff]
    %v237 = vld [vmem:[#allocation8 + $0x70] sm:$0xff]
    %v238 = vld [vmem:[#allocation8 + $0x78] sm:$0xff]
    %v239 = vld [vmem:[%s5] sm:$0x1]
    %v241 = vperm.slane %v239, 0
    %243 = vmatpush.msra.mxu0 %v238
    %244 = vmatpush.msra.mxu0 %v237
    %245 = vmatpush.msra.mxu0 %v236
    %246 = vmatpush.msra.mxu0 %v235
    %247 = vmatpush.msra.mxu0 %v234
    %248 = vmatpush.msra.mxu0 %v233
    %249 = vmatpush.msra.mxu0 %v232
    %250 = vmatpush.msra.mxu0 %v231
    %251 = vmatpush.msra.mxu0 %v230
    %252 = vmatpush.msra.mxu0 %v229
    %253 = vmatpush.msra.mxu0 %v228
    %254 = vmatpush.msra.mxu0 %v227
    %255 = vmatpush.msra.mxu0 %v226
    %256 = vmatpush.msra.mxu0 %v225
    %257 = vmatpush.msra.mxu0 %v224
    %258 = vmatpush.msra.mxu0 %v223
    %259 = vmatmul.f32.gmra.mxu0 %v221
    %v260 = vpop.f32.mrf.mxu0
    %v261 = vadd.f32 %v241, %v260
    %262 = vmatmul.f32.gmra.mxu0 %v222
    %v263 = vpop.f32.mrf.mxu0
    %v264 = vadd.f32 %v241, %v263
    %265 = vdwg.mxu0
    %266 = vst [vmem:[#allocation10] sm:$0xff] %v261
    %267 = vst [vmem:[#allocation10 + $0x8] sm:$0xff] %v264
    // Predicated region
    $region42: #{tpu_custom_call.1} parent=1 // pred_check
      _
    $region43: #{tpu_custom_call.1} parent=1 // pred_check_branch
      %269 = sbr.rel (0) target = $region45
    $region44: #{tpu_custom_call.1} parent=1 // pred_region
      %271 = vsyncadd [#allocation4], 0
      %s272 = sshll.u32 [#allocation10], 4
      %s273 = int_to_ptr.vmem [resolvable:$true] %s272
      %s274 = sshll.u32 %s6, 4
      %s275 = int_to_ptr.hbm [resolvable:$true] %s274
      %280 = dma.vmem_to_hbm [thread:$0]  %s273, 256, %s275, [#allocation4], 128, 128, 8
    $region45: #{tpu_custom_call.1} parent=1 // pred_fallthru
      _
    // Predicated region
    $region46: #{tpu_custom_call.1} parent=1 // pred_check
      _
    $region47: #{tpu_custom_call.1} parent=1 // pred_check_branch
      %282 = sbr.rel (0) target = $region49
    $region48: #{tpu_custom_call.1} parent=1 // pred_region
      %284 = dma.done [#allocation4], 256
    $region49: #{tpu_custom_call.1} parent=1 // pred_fallthru
      _
    %285 = vsyncpa [#allocation3], 1
    %286 = vsyncpa [#allocation6], 1
    %287 = vsyncpa [#allocation9], 1
    %288 = vsyncpa [#allocation4], 1

</llo_original>
